<compile_context>
chip_gen: v6e
topology: v6e:2x2x1
jax: 0.10.0
libtpu: 0.0.40
codegen_flags: <defaults>
</compile_context>

<pallas_src>
import math
import functools

import jax
import jax.numpy as jnp
from jax import lax
from jax.experimental import pallas as pl
from jax.experimental.pallas import tpu as pltpu

# Above this batch size we switch from the single-block kernel to the
# row-tiled grid kernel (2 inputs x 2 pipeline buffers x B^2 would otherwise
# grow without bound; tiling keeps VMEM flat).
_SMALL_B_MAX = 256


def _off_diag_margin_sum(sims_ref, *, margin, b, row0):
    """Sum of relu(margin - (pos - S)) over valid off-diagonal entries of a
    (tile_m, B) row-slab of one similarity matrix.  Upcasts in-kernel."""
    s = sims_ref[...].astype(jnp.float32)
    rows = row0 + lax.broadcasted_iota(jnp.int32, s.shape, 0)  # global row idx
    cols = lax.broadcasted_iota(jnp.int32, s.shape, 1)

    diag = rows == cols
    # pos = diagonal element of each row, extracted with a masked row-reduce
    # (VPU select + XLU reduce, no gather); exact in f32.
    pos = jnp.sum(jnp.where(diag, s, 0.0), axis=-1, keepdims=True)
    max_margin = jnp.maximum(jnp.float32(margin) - (pos - s), 0.0)

    # Keep only valid (row < B) off-diagonal entries.  jnp.where selects, so
    # garbage in row-padded edge tiles never propagates.
    keep = jnp.logical_and(rows < b, jnp.logical_not(diag))
    return jnp.sum(jnp.where(keep, max_margin, 0.0))


# --------------------------------------------------------------------------
# Small-B path: one grid point, whole matrices in VMEM, scalar result in SMEM.
# --------------------------------------------------------------------------
def _ranking_loss_small_kernel(t2v_ref, v2t_ref, out_ref, *, margin, b):
    total = (
        _off_diag_margin_sum(t2v_ref, margin=margin, b=b, row0=0)
        + _off_diag_margin_sum(v2t_ref, margin=margin, b=b, row0=0)
    )
    # Both matrices share the same per-matrix mean denominator B*(B-1);
    # compile-time reciprocal multiply instead of a divide.
    inv_denom = 1.0 / float(b * (b - 1))
    out_ref[0] = total * jnp.float32(inv_denom)


def _ranking_loss_small(t2v, v2t, *, margin):
    b = t2v.shape[0]
    bytes_in = t2v.size * jnp.dtype(t2v.dtype).itemsize \
        + v2t.size * jnp.dtype(v2t.dtype).itemsize
    kernel = functools.partial(_ranking_loss_small_kernel, margin=float(margin), b=b)

    out = pl.pallas_call(
        kernel,
        out_shape=jax.ShapeDtypeStruct((1,), jnp.float32),
        in_specs=[
            pl.BlockSpec((b, b), lambda: (0, 0)),
            pl.BlockSpec((b, b), lambda: (0, 0)),
        ],
        # Scalar result lives in SMEM: no lane-sparse (1,1) VMEM tile, no
        # masked partial store, no near-empty vector output DMA.
        out_specs=pl.BlockSpec(memory_space=pltpu.MemorySpace.SMEM),
        cost_estimate=pl.CostEstimate(
            flops=10 * b * b,
            bytes_accessed=bytes_in + 4,
            transcendentals=0,
        ),
        compiler_params=pltpu.CompilerParams(
            vmem_limit_bytes=max(
                1 << 20, 16 * b * b * jnp.dtype(t2v.dtype).itemsize
            ),
        ),
    )(t2v, v2t)
    return out[0]


# --------------------------------------------------------------------------
# Large-B path: row-tiled "parallel" grid, per-tile partial sums, host reduce.
# --------------------------------------------------------------------------
def _ranking_loss_tile_kernel(t2v_ref, v2t_ref, part_ref, *, margin, b):
    tile_m = t2v_ref.shape[0]
    row0 = pl.program_id(0) * tile_m
    total = (
        _off_diag_margin_sum(t2v_ref, margin=margin, b=b, row0=row0)
        + _off_diag_margin_sum(v2t_ref, margin=margin, b=b, row0=row0)
    )
    # Lane-dense (1, 8, 128) partial-sum tile: full unmasked vector store.
    part_ref[...] = jnp.broadcast_to(total, part_ref.shape).astype(jnp.float32)


def _pick_tile_m(b):
    tile_m = min(b, 512)
    # Keep the f32 working set per tile modest (<= ~2 MiB per matrix) so
    # 2 inputs x 2 pipeline buffers + f32 temps stay well inside the scoped
    # VMEM default even on v7x (32 MiB scoped / 64 MiB physical).
    while tile_m > 8 and tile_m * b * 4 > (2 << 20):
        tile_m //= 2
    return tile_m


def _ranking_loss_tiled(t2v, v2t, *, margin, tile_m=None):
    b = t2v.shape[0]
    if tile_m is None:
        tile_m = _pick_tile_m(b)
    g = pl.cdiv(b, tile_m)
    bytes_in = t2v.size * jnp.dtype(t2v.dtype).itemsize \
        + v2t.size * jnp.dtype(v2t.dtype).itemsize
    kernel = functools.partial(_ranking_loss_tile_kernel, margin=float(margin), b=b)

    partials = pl.pallas_call(
        kernel,
        out_shape=jax.ShapeDtypeStruct((g, 8, 128), jnp.float32),
        grid=(g,),
        in_specs=[
            pl.BlockSpec((tile_m, b), lambda i: (i, 0)),
            pl.BlockSpec((tile_m, b), lambda i: (i, 0)),
        ],
        out_specs=pl.BlockSpec((1, 8, 128), lambda i: (i, 0, 0)),
        cost_estimate=pl.CostEstimate(
            flops=10 * b * b,
            bytes_accessed=bytes_in + g * 8 * 128 * 4,
            transcendentals=0,
        ),
        # Each row tile writes its own partial-sum block -> fully independent,
        # so the grid axis is "parallel" (both TCs on v7x split the tiles).
        compiler_params=pltpu.CompilerParams(
            dimension_semantics=("parallel",),
        ),
    )(t2v, v2t)

    inv_denom = 1.0 / float(b * (b - 1))
    return jnp.sum(partials[:, 0, 0]) * jnp.float32(inv_denom)


def quantized_ranking_loss(quant_cls_t2v_sims, quant_cls_v2t_sims, *, margin,
                           tile_m=None):
    """Pallas wrapper: returns scalar loss = rank_loss(t2v) + rank_loss(v2t)."""
    b = quant_cls_t2v_sims.shape[0]
    assert quant_cls_t2v_sims.shape == (b, b)
    assert quant_cls_v2t_sims.shape == (b, b)
    assert b >= 2, "rank loss is undefined for batch size < 2 (division by zero)"

    if tile_m is None and b <= _SMALL_B_MAX:
        return _ranking_loss_small(
            quant_cls_t2v_sims, quant_cls_v2t_sims, margin=margin
        )
    return _ranking_loss_tiled(
        quant_cls_t2v_sims, quant_cls_v2t_sims, margin=margin, tile_m=tile_m
    )


class QuantizedRankingLossPallas:
    """Mirror of the PyTorch module; forward() runs the Pallas kernel."""

    def __init__(self, margin, total_epochs, pq_reg_loss_weight):
        self.margin = margin
        self.total_epochs = total_epochs
        self._smoothing_weight_list = [
            math.cos(e * math.pi / 2 / total_epochs) for e in range(total_epochs + 1)
        ]
        self._pq_reg_loss_weight = pq_reg_loss_weight

    @property
    def pq_reg_loss_weight(self):
        return self._pq_reg_loss_weight

    def smoothing_schedule(self, epoch):
        return self._smoothing_weight_list[epoch]

    def __call__(self, quant_cls_t2v_sims, quant_cls_v2t_sims, epoch):
        # `epoch` is unused in the reference forward pass.
        return quantized_ranking_loss(
            quant_cls_t2v_sims, quant_cls_v2t_sims, margin=self.margin
        )


def _reference_loss(t2v, v2t, margin):
    """Plain-JAX reference for sanity checking."""

    def rank_loss(sims):
        b = sims.shape[0]
        pos = jnp.diag(sims)[:, None]
        mm = jnp.maximum(margin - (pos - sims), 0.0)
        mask = ~jnp.eye(b, dtype=bool)
        return jnp.sum(jnp.where(mask, mm, 0.0)) / (b * (b - 1))

    return rank_loss(t2v) + rank_loss(v2t)


if __name__ == "__main__":
    margin = 0.2
    total_epochs = 10
    pq_reg_loss_weight = 0.1
    loss_fn = QuantizedRankingLossPallas(margin, total_epochs, pq_reg_loss_weight)

    key = jax.random.PRNGKey(0)
    k1, k2, k3, k4 = jax.random.split(key, 4)

    # --- small-B path (module's typical use: B x B similarity matrices) ---
    B = 8
    t2v_sims = jax.random.normal(k1, (B, B), dtype=jnp.float32)
    v2t_sims = jax.random.normal(k2, (B, B), dtype=jnp.float32)

    loss = jax.block_until_ready(loss_fn(t2v_sims, v2t_sims, epoch=0))
    ref = jax.block_until_ready(_reference_loss(t2v_sims, v2t_sims, margin))
    assert jnp.allclose(loss, ref, atol=1e-5, rtol=1e-5), (loss, ref)

    # bf16 inputs: stay bf16 in HBM, kernel upcasts in VMEM.
    t2v_bf16 = t2v_sims.astype(jnp.bfloat16)
    v2t_bf16 = v2t_sims.astype(jnp.bfloat16)
    loss_bf16 = jax.block_until_ready(loss_fn(t2v_bf16, v2t_bf16, epoch=0))
    ref_bf16 = jax.block_until_ready(
        _reference_loss(
            t2v_bf16.astype(jnp.float32), v2t_bf16.astype(jnp.float32), margin
        )
    )
    assert jnp.allclose(loss_bf16, ref_bf16, atol=1e-4, rtol=1e-4), (loss_bf16, ref_bf16)

    # --- row-tiled large-B path (exercise multi-tile grid + edge-row masking) ---
    B2 = 384
    t2v_big = jax.random.normal(k3, (B2, B2), dtype=jnp.float32)
    v2t_big = jax.random.normal(k4, (B2, B2), dtype=jnp.float32)
    ref_big = jax.block_until_ready(_reference_loss(t2v_big, v2t_big, margin))

    # tile divides B exactly (3 tiles of 128 rows)
    loss_t128 = jax.block_until_ready(
        quantized_ranking_loss(t2v_big, v2t_big, margin=margin, tile_m=128)
    )
    assert jnp.allclose(loss_t128, ref_big, atol=2e-4, rtol=2e-4), (loss_t128, ref_big)

    # tile does NOT divide B (2 tiles of 256 rows; last tile row-masked)
    loss_t256 = jax.block_until_ready(
        quantized_ranking_loss(t2v_big, v2t_big, margin=margin, tile_m=256)
    )
    assert jnp.allclose(loss_t256, ref_big, atol=2e-4, rtol=2e-4), (loss_t256, ref_big)

    print("KERNEL_OK")
</pallas_src>

<mosaic_0001>
module attributes {stable_mosaic.version = 11 : i64} {
  func.func @_ranking_loss_small_kernel(%arg0: memref<8x8xf32, #tpu.memory_space<vmem>>, %arg1: memref<8x8xf32, #tpu.memory_space<vmem>>, %arg2: memref<1xf32, #tpu.memory_space<smem>>) attributes {dimension_semantics = [], scalar_prefetch = 0 : i64, scratch_operands = 0 : i64, tpu.core_type = #tpu.core_type<tc>} {
    %c0 = arith.constant 0 : index
    %c0_0 = arith.constant 0 : index
    %0 = vector.load %arg0[%c0, %c0_0] : memref<8x8xf32, #tpu.memory_space<vmem>>, vector<8x8xf32>
    %1 = tpu.iota {dimensions = array<i32: 0>} : vector<8x8xi32>
    %c0_i32 = arith.constant 0 : i32
    %2 = vector.broadcast %c0_i32 : i32 to vector<8x8xi32>
    %3 = arith.addi %2, %1 : vector<8x8xi32>
    %4 = tpu.iota {dimensions = array<i32: 1>} : vector<8x8xi32>
    %5 = arith.cmpi eq, %3, %4 : vector<8x8xi32>
    %cst = arith.constant 0.000000e+00 : f32
    %6 = vector.broadcast %cst : f32 to vector<8x8xf32>
    %7 = arith.select %5, %0, %6 : vector<8x8xi1>, vector<8x8xf32>
    %cst_1 = arith.constant dense<0.000000e+00> : vector<8xf32>
    %8 = vector.multi_reduction <add>, %7, %cst_1 [1] : vector<8x8xf32> to vector<8xf32>
    %9 = vector.shape_cast %8 : vector<8xf32> to vector<8x1xf32>
    %10 = vector.broadcast %9 : vector<8x1xf32> to vector<8x8xf32>
    %11 = arith.subf %10, %0 : vector<8x8xf32>
    %cst_2 = arith.constant 2.000000e-01 : f32
    %12 = vector.broadcast %cst_2 : f32 to vector<8x8xf32>
    %13 = arith.subf %12, %11 : vector<8x8xf32>
    %cst_3 = arith.constant 0.000000e+00 : f32
    %14 = vector.broadcast %cst_3 : f32 to vector<8x8xf32>
    %15 = arith.maximumf %13, %14 : vector<8x8xf32>
    %c8_i32 = arith.constant 8 : i32
    %16 = vector.broadcast %c8_i32 : i32 to vector<8x8xi32>
    %17 = arith.cmpi slt, %3, %16 : vector<8x8xi32>
    %cst_4 = arith.constant dense<true> : vector<8x8xi1>
    %18 = arith.xori %5, %cst_4 : vector<8x8xi1>
    %19 = arith.andi %17, %18 : vector<8x8xi1>
    %cst_5 = arith.constant 0.000000e+00 : f32
    %20 = vector.broadcast %cst_5 : f32 to vector<8x8xf32>
    %21 = arith.select %19, %15, %20 : vector<8x8xi1>, vector<8x8xf32>
    %22 = vector.shape_cast %21 : vector<8x8xf32> to vector<1x8x8xf32>
    %cst_6 = arith.constant dense<0.000000e+00> : vector<1xf32>
    %23 = vector.multi_reduction <add>, %22, %cst_6 [1, 2] : vector<1x8x8xf32> to vector<1xf32>
    %24 = vector.shape_cast %23 : vector<1xf32> to vector<1x1x1xf32>
    %25 = vector.extract %24[0, 0, 0] : f32 from vector<1x1x1xf32>
    %c0_7 = arith.constant 0 : index
    %c0_8 = arith.constant 0 : index
    %26 = vector.load %arg1[%c0_7, %c0_8] : memref<8x8xf32, #tpu.memory_space<vmem>>, vector<8x8xf32>
    %27 = tpu.iota {dimensions = array<i32: 0>} : vector<8x8xi32>
    %c0_i32_9 = arith.constant 0 : i32
    %28 = vector.broadcast %c0_i32_9 : i32 to vector<8x8xi32>
    %29 = arith.addi %28, %27 : vector<8x8xi32>
    %30 = tpu.iota {dimensions = array<i32: 1>} : vector<8x8xi32>
    %31 = arith.cmpi eq, %29, %30 : vector<8x8xi32>
    %cst_10 = arith.constant 0.000000e+00 : f32
    %32 = vector.broadcast %cst_10 : f32 to vector<8x8xf32>
    %33 = arith.select %31, %26, %32 : vector<8x8xi1>, vector<8x8xf32>
    %cst_11 = arith.constant dense<0.000000e+00> : vector<8xf32>
    %34 = vector.multi_reduction <add>, %33, %cst_11 [1] : vector<8x8xf32> to vector<8xf32>
    %35 = vector.shape_cast %34 : vector<8xf32> to vector<8x1xf32>
    %36 = vector.broadcast %35 : vector<8x1xf32> to vector<8x8xf32>
    %37 = arith.subf %36, %26 : vector<8x8xf32>
    %cst_12 = arith.constant 2.000000e-01 : f32
    %38 = vector.broadcast %cst_12 : f32 to vector<8x8xf32>
    %39 = arith.subf %38, %37 : vector<8x8xf32>
    %cst_13 = arith.constant 0.000000e+00 : f32
    %40 = vector.broadcast %cst_13 : f32 to vector<8x8xf32>
    %41 = arith.maximumf %39, %40 : vector<8x8xf32>
    %c8_i32_14 = arith.constant 8 : i32
    %42 = vector.broadcast %c8_i32_14 : i32 to vector<8x8xi32>
    %43 = arith.cmpi slt, %29, %42 : vector<8x8xi32>
    %cst_15 = arith.constant dense<true> : vector<8x8xi1>
    %44 = arith.xori %31, %cst_15 : vector<8x8xi1>
    %45 = arith.andi %43, %44 : vector<8x8xi1>
    %cst_16 = arith.constant 0.000000e+00 : f32
    %46 = vector.broadcast %cst_16 : f32 to vector<8x8xf32>
    %47 = arith.select %45, %41, %46 : vector<8x8xi1>, vector<8x8xf32>
    %48 = vector.shape_cast %47 : vector<8x8xf32> to vector<1x8x8xf32>
    %cst_17 = arith.constant dense<0.000000e+00> : vector<1xf32>
    %49 = vector.multi_reduction <add>, %48, %cst_17 [1, 2] : vector<1x8x8xf32> to vector<1xf32>
    %50 = vector.shape_cast %49 : vector<1xf32> to vector<1x1x1xf32>
    %51 = vector.extract %50[0, 0, 0] : f32 from vector<1x1x1xf32>
    %52 = arith.addf %25, %51 : f32
    %cst_18 = arith.constant 0.0178571437 : f32
    %53 = arith.mulf %52, %cst_18 : f32
    %c0_19 = arith.constant 0 : index
    %54 = memref.load %arg2[%c0_19] : memref<1xf32, #tpu.memory_space<smem>>
    memref.store %53, %arg2[%c0_19] : memref<1xf32, #tpu.memory_space<smem>>
    return
  }
}

</mosaic_0001>

<llo_original>
// kernel: tpu_custom_call.1
$region0: #{tpu_custom_call.1}
  #allocation0 [shape = 'u32[]', space=smem, size = 0x4, offset = 0x4, fixed_abs, tag = 'smem constant byte address 0x4 - core index']
  #allocation1 [shape = 'u32[144,128]{1,0:T(1,128)}', space=vmem, size = 0x12000, scoped, tag = 'internal scratch']
  %s0 = inlined_call_operand.hbm [shape: f32[8,8], index: 0, kind: input, shape index: {}]
  %s1 = inlined_call_operand.hbm [shape: f32[8,8], index: 1, kind: input, shape index: {}]
  %s2 = inlined_call_operand.hbm [shape: f32[1], index: 2, kind: output, shape index: {}]
  %s3 = sld [smem:[#allocation0]]
  $region26: #{tpu_custom_call.1} parent=0
    _
  %s5 = ssub.s32 1, %s3
  %s6 = scalar_select 0, %s5, %s3
  $region1: #{tpu_custom_call.1} parent=0
    #allocation2 [shape = 'u8[4096]{0}', space=vmem, size = 0x1000, scoped, tag = 'input window, operand 0, single buffered']
    #allocation3 [shape = 's32[1]{0}', space=sflag, size = 0x4, scoped, tag = 'scoped memory for tpu_custom_call.1']
    #allocation4 [shape = 's32[1]{0}', space=sflag, size = 0x4, scoped, tag = 'scoped memory for tpu_custom_call.1']
    #allocation5 [shape = 'u8[4096]{0}', space=vmem, size = 0x1000, scoped, tag = 'input window, operand 1, single buffered']
    #allocation6 [shape = 's32[1]{0}', space=sflag, size = 0x4, scoped, tag = 'scoped memory for tpu_custom_call.1']
    #allocation7 [shape = 'u8[512]{0}', space=smem, size = 0x200, scoped, tag = 'output window, operand 0, single buffered']
    %7 = vsyncpa [#allocation3], 0
    %8 = vsyncpa [#allocation6], 0
    %9 = vsyncpa [#allocation4], 0
    // Predicated region
    $region2: #{tpu_custom_call.1} parent=1 // pred_check
      _
    $region3: #{tpu_custom_call.1} parent=1 // pred_check_branch
      %11 = sbr.rel (0) target = $region5
    $region4: #{tpu_custom_call.1} parent=1 // pred_region
      %s13 = ssub.s32 128, 128
      %14 = vsyncadd [#allocation3], %s13
      %s16 = sshll.u32 [#allocation2], 4
      %s17 = int_to_ptr.vmem [resolvable:$true] %s16
      %19 = dma.hbm_to_vmem [thread:$0]  %s0, 128, %s17, [#allocation3]
    $region5: #{tpu_custom_call.1} parent=1 // pred_fallthru
      _
    // Predicated region
    $region6: #{tpu_custom_call.1} parent=1 // pred_check
      _
    $region7: #{tpu_custom_call.1} parent=1 // pred_check_branch
      %21 = sbr.rel (0) target = $region9
    $region8: #{tpu_custom_call.1} parent=1 // pred_region
      %s23 = ssub.s32 128, 128
      %24 = vsyncadd [#allocation6], %s23
      %s26 = sshll.u32 [#allocation5], 4
      %s27 = int_to_ptr.vmem [resolvable:$true] %s26
      %29 = dma.hbm_to_vmem [thread:$0]  %s1, 128, %s27, [#allocation6]
    $region9: #{tpu_custom_call.1} parent=1 // pred_fallthru
      _
    // Predicated region
    $region10: #{tpu_custom_call.1} parent=1 // pred_check
      _
    $region11: #{tpu_custom_call.1} parent=1 // pred_check_branch
      %31 = sbr.rel (0) target = $region13
    $region12: #{tpu_custom_call.1} parent=1 // pred_region
      %32 = dma.done [#allocation3], 128
    $region13: #{tpu_custom_call.1} parent=1 // pred_fallthru
      _
    // Predicated region
    $region14: #{tpu_custom_call.1} parent=1 // pred_check
      _
    $region15: #{tpu_custom_call.1} parent=1 // pred_check_branch
      %34 = sbr.rel (0) target = $region17
    $region16: #{tpu_custom_call.1} parent=1 // pred_region
      %35 = dma.done [#allocation6], 128
    $region17: #{tpu_custom_call.1} parent=1 // pred_fallthru
      _
    %v36 = vld [vmem:[#allocation2] sm:$0xff]
    %v37 = vlaneseq
    %v38 = vshrl.u32 %v37, 7
    %v39 = vlaneseq
    %v40 = vand.u32 %v39, 127
    %vm41 = vcmp.eq.s32.totalorder %v38, %v40
    %v42 = vsel %vm41, %v36, 0.0
    %vm43 = vcmask 64512
    %v44 = vsel %vm43, %v42, 0.0
    %45 = vadd.xlane.f32.xlu0 %v44
    %v46 = vpop.xlane.xlu0 %45
    %v47 = vsub.f32 %v46, %v36
    %v48 = vsub.f32 0.2, %v47
    %v49 = vmax.f32 %v48, 0.0
    %vm50 = vcmp.lt.s32.totalorder %v38, 8
    %vm51 = vmxor %vm41, 1
    %vm52 = vmand %vm50, %vm51
    %v53 = vsel %vm52, %v49, 0.0
    %v54 = vsel %vm43, %v53, 0.0
    %55 = vadd.xlane.f32.xlu0 %v54
    %v56 = vpop.xlane.xlu0 %55
    %v57 = vrot.slane %v56, 4
    %v58 = vadd.f32 %v56, %v57
    %v59 = vrot.slane %v58, 2
    %v60 = vadd.f32 %v58, %v59
    %v61 = vrot.slane %v60, 1
    %v62 = vadd.f32 %v60, %v61
    %s63 = vtos %v62
    %v64 = vld [vmem:[#allocation5] sm:$0xff]
    %v65 = vsel %vm41, %v64, 0.0
    %v66 = vsel %vm43, %v65, 0.0
    %67 = vadd.xlane.f32.xlu0 %v66
    %v68 = vpop.xlane.xlu0 %67
    %v69 = vsub.f32 %v68, %v64
    %v70 = vsub.f32 0.2, %v69
    %v71 = vmax.f32 %v70, 0.0
    %v72 = vsel %vm52, %v71, 0.0
    %v73 = vsel %vm43, %v72, 0.0
    %74 = vadd.xlane.f32.xlu0 %v73
    %v75 = vpop.xlane.xlu0 %74
    %v76 = vrot.slane %v75, 4
    %v77 = vadd.f32 %v75, %v76
    %v78 = vrot.slane %v77, 2
    %v79 = vadd.f32 %v77, %v78
    %v80 = vrot.slane %v79, 1
    %v81 = vadd.f32 %v79, %v80
    %s82 = vtos %v81
    %s83 = sadd.f32 %s63, %s82
    %s84 = smul.f32 %s83, 0.017857144
    %s85 = scalar_lea.smem [#allocation7], 0
    %86 = sst [smem:[%s85]] %s84
    // Predicated region
    $region18: #{tpu_custom_call.1} parent=1 // pred_check
      _
    $region19: #{tpu_custom_call.1} parent=1 // pred_check_branch
      %88 = sbr.rel (0) target = $region21
    $region20: #{tpu_custom_call.1} parent=1 // pred_region
      %s90 = ssub.s32 16, 16
      %91 = vsyncadd [#allocation4], %s90
      %94 = dma.smem_to_hbm [#allocation7], 16, %s2, [#allocation4]
    $region21: #{tpu_custom_call.1} parent=1 // pred_fallthru
      _
    // Predicated region
    $region22: #{tpu_custom_call.1} parent=1 // pred_check
      _
    $region23: #{tpu_custom_call.1} parent=1 // pred_check_branch
      %96 = sbr.rel (0) target = $region25
    $region24: #{tpu_custom_call.1} parent=1 // pred_region
      %97 = dma.done [#allocation4], 16
    $region25: #{tpu_custom_call.1} parent=1 // pred_fallthru
      _
    %98 = sfence
    %99 = vsyncpa [#allocation3], 1
    %100 = vsyncpa [#allocation6], 1
    %101 = vsyncpa [#allocation4], 1

</llo_original>
